<compile_context>
chip_gen: v7x
topology: tpu7x:2x2x1
jax: 0.10.0
libtpu: 0.0.40
codegen_flags: <defaults>
</compile_context>

<pallas_src>
import numpy as np
import jax
import jax.numpy as jnp
from jax import lax
from jax.experimental import pallas as pl
from jax.experimental.pallas import tpu as pltpu


_MIN_GOOD_BLOCK = 512 * 1024   # blocks >= this measure ~85%+ of HBM roofline


def _vmem_budget_bytes():
    """Generation-aware VMEM budget (never the entire physical VMEM)."""
    try:
        info = pltpu.get_tpu_info()
        phys = int(getattr(info, "vmem_capacity_bytes", 0)) or (64 << 20)
    except Exception:
        phys = 64 << 20                      # conservative fallback (v7x-sized)
    return phys, (phys * 3) // 4             # leave 25% headroom


def _roll2d(v, shift, axis):
    """Cyclic roll of a 2-D VMEM tile; matches jnp.roll semantics."""
    n = v.shape[axis]
    shift = shift % n
    if shift == 0:
        return v
    if v.dtype.itemsize == 4:
        # XLU rotate — uses the otherwise idle cross-lane slot.
        return pltpu.roll(v, shift=shift, axis=axis)
    # Rare fallback: packed dtype that could not be reinterpreted as uint32
    # (e.g. bf16 with odd C).  Slice+concat is dtype-agnostic and still hidden
    # under the DMA (vld/vst slack).
    if axis == 0:
        return jnp.concatenate([v[n - shift:, :], v[:n - shift, :]], axis=0)
    return jnp.concatenate([v[:, n - shift:], v[:, :n - shift]], axis=1)


def cyclic_shift_3d(x, displacement, *, _force_path=None):
    """Pallas implementation of CyclicShift3D.forward.

    x: (B, X, Y, Z, C) array. displacement: int or length-3 sequence.
    Semantics match torch.roll(x, shifts=displacement, dims=(1, 2, 3)).
    """
    if isinstance(displacement, (int, np.integer)):
        displacement = (int(displacement),) * 3
    displacement = tuple(int(d) for d in np.asarray(displacement).reshape(-1))
    assert len(displacement) == 3, "displacement must be 1 or 3 dimension"
    dx, dy, dz = displacement

    assert x.ndim == 5, "expected (B, X, Y, Z, C)"
    B, X, Y, Z, C = x.shape
    orig_dtype = x.dtype
    itemsize = x.dtype.itemsize

    # --- Sub-32-bit dtypes: reinterpret groups of channels as uint32 lanes so
    # all in-kernel rolls/stores are 32-bit (avoids packed-sublane rotates).
    # Valid because every roll moves whole channel vectors (C is never rolled).
    pack = 1
    work = x
    if itemsize < 4 and (C * itemsize) % 4 == 0:
        pack = 4 // itemsize
        work = lax.bitcast_convert_type(
            x.reshape(B, X, Y, Z, C // pack, pack), jnp.uint32)
    Cw = C // pack
    wdt = work.dtype
    wisz = jnp.dtype(wdt).itemsize
    ZC = Z * Cw

    # Static, normalized shifts.
    dx_mod = dx % X
    off_x = (-dx) % X            # input block offset implementing the X roll
    dy_mod = dy % Y              # sublane roll amount
    off_z = (-dz) % Z            # input lane-block offset (path "C")
    dzc = (dz % Z) * Cw          # Z roll on the fused (Z*C) lane axis

    # Lane-dense view: fuse Z and C so the last dim is wide.
    # (If Z*C is not a multiple of 128 we accept masked stores; padding C in
    # the wrapper would add whole extra HBM passes on a bandwidth-bound op.)
    x2 = work.reshape(B, X, Y, ZC)

    slab_bytes = Y * ZC * wisz            # one (Y, Z*C) plane
    full_bytes = X * slab_bytes           # a whole (X, Y, Z*C) volume per batch

    phys, budget = _vmem_budget_bytes()
    max_block = budget // 6               # in+out, double-buffered, + headroom

    # ---------------- path selection (all static Python) ----------------
    if _force_path is not None:
        path = _force_path
    elif slab_bytes > max_block:
        # Single (Y, Z*C) slab blows the per-block budget (v7x-sized VMEM):
        # split Z via the DMA index_map, keep (Y, C) blocks lane-dense.
        if Z > 1 and Cw % 128 == 0 and Y * Cw * wisz <= max_block:
            path = "C"
        else:
            path = "A"                    # last resort; VMEM cap stretched below
    elif (full_bytes <= max_block and slab_bytes < _MIN_GOOD_BLOCK
          and B >= 2 and X <= 128):
        # Small slabs: fold all X into one block so per-grid-step overhead
        # stops dominating.  B >= 2 keeps >= 1 parallel grid point per v7x TC;
        # with B == 1 we keep the (B, X) grid instead for megacore parallelism.
        path = "B"
    else:
        path = "A"

    # ---------------- grid / BlockSpecs / kernel per path ----------------
    if path == "B":
        grid = (B,)
        blk = (pl.Squeezed(), X, Y, ZC)
        in_map = lambda b: (b, 0, 0, 0)
        out_map = lambda b: (b, 0, 0, 0)
        block_bytes = full_bytes

        def kernel(x_ref, o_ref):
            # refs: (X, Y, Z*C).  X roll = plane permutation inside VMEM;
            # Y roll = sublane rotate; fused Z roll = lane rotate.
            for i in range(X):
                v = x_ref[i]
                if dy_mod:
                    v = _roll2d(v, dy_mod, 0)
                if dzc:
                    v = _roll2d(v, dzc, 1)
                o_ref[(i + dx_mod) % X] = v

    elif path == "C":
        assert Cw % 128 == 0, "(Y, C)-block fallback requires packed C % 128 == 0"
        grid = (B, X, Z)
        blk = (pl.Squeezed(), pl.Squeezed(), Y, Cw)
        in_map = lambda b, i, k: (b, (i + off_x) % X, 0, (k + off_z) % Z)
        out_map = lambda b, i, k: (b, i, 0, k)
        block_bytes = Y * Cw * wisz

        def kernel(x_ref, o_ref):
            v = x_ref[...]                        # (Y, C); X and Z rolls via DMA
            if dy_mod:
                v = _roll2d(v, dy_mod, 0)
            o_ref[...] = v

    else:  # "A"
        grid = (B, X)
        blk = (pl.Squeezed(), pl.Squeezed(), Y, ZC)
        in_map = lambda b, i: (b, (i + off_x) % X, 0, 0)
        out_map = lambda b, i: (b, i, 0, 0)
        block_bytes = slab_bytes

        def kernel(x_ref, o_ref):
            v = x_ref[...]                        # (Y, Z*C); X roll via DMA
            if dy_mod:
                v = _roll2d(v, dy_mod, 0)
            if dzc:
                v = _roll2d(v, dzc, 1)
            o_ref[...] = v

    # ---------------- VMEM cap: only what the pipeline needs ----------------
    need = 4 * block_bytes + (2 << 20)    # 2 in-bufs + 2 out-bufs + headroom
    vmem_limit = int(min(max(need, 16 << 20), budget))
    if need > budget:                     # oversized-slab last resort
        vmem_limit = int(min(need, (phys * 9) // 10))

    out2 = pl.pallas_call(
        kernel,
        out_shape=jax.ShapeDtypeStruct((B, X, Y, ZC), wdt),
        grid=grid,
        in_specs=[pl.BlockSpec(blk, in_map)],
        out_specs=pl.BlockSpec(blk, out_map),
        compiler_params=pltpu.CompilerParams(
            dimension_semantics=("parallel",) * len(grid),
            vmem_limit_bytes=vmem_limit,
        ),
        cost_estimate=pl.CostEstimate(
            flops=0,
            transcendentals=0,
            bytes_accessed=2 * work.size * wisz,
        ),
    )(x2)

    out = out2.reshape(B, X, Y, Z, Cw)
    if pack > 1:
        out = lax.bitcast_convert_type(out, orig_dtype).reshape(B, X, Y, Z, C)
    return out


if __name__ == "__main__":
    # 1) Small volume -> whole-X path "B": grid=(B,), X roll done in-kernel.
    key = jax.random.PRNGKey(0)
    B, X, Y, Z, C = 2, 8, 8, 8, 32
    x = jax.random.normal(key, (B, X, Y, Z, C), dtype=jnp.float32)
    for disp in [(2, -3, 1), 3, (9, 0, -10), (0, 0, 0)]:
        out = jax.block_until_ready(cyclic_shift_3d(x, disp))
        d = (disp,) * 3 if isinstance(disp, int) else disp
        ref = jnp.roll(x, shift=d, axis=(1, 2, 3))
        assert out.shape == x.shape and out.dtype == x.dtype
        np.testing.assert_array_equal(np.asarray(out), np.asarray(ref))

    # 2) bf16 (packed dtype): channels reinterpreted as uint32 lanes in the
    #    wrapper so the in-kernel rolls stay 32-bit (review concern #3).
    xb = jax.random.normal(jax.random.PRNGKey(1), (2, 4, 16, 8, 32),
                           dtype=jnp.bfloat16)
    out_b = jax.block_until_ready(cyclic_shift_3d(xb, (1, 5, -2)))
    ref_b = jnp.roll(xb, shift=(1, 5, -2), axis=(1, 2, 3))
    np.testing.assert_array_equal(np.asarray(out_b.astype(jnp.float32)),
                                  np.asarray(ref_b.astype(jnp.float32)))

    # 3) 512 KiB (Y, Z*C) slabs -> per-X-slab path "A": X roll free via DMA.
    xa = jax.random.normal(jax.random.PRNGKey(2), (1, 4, 16, 16, 512),
                           dtype=jnp.float32)
    out_a = jax.block_until_ready(cyclic_shift_3d(xa, (3, -5, 7)))
    ref_a = jnp.roll(xa, shift=(3, -5, 7), axis=(1, 2, 3))
    np.testing.assert_array_equal(np.asarray(out_a), np.asarray(ref_a))

    # 4) Force the (Y, C)-block fallback path "C" (huge-slab / v7x budget path)
    #    on a small shape to validate it end-to-end.
    xc = jax.random.normal(jax.random.PRNGKey(3), (1, 4, 8, 4, 128),
                           dtype=jnp.float32)
    out_c = jax.block_until_ready(cyclic_shift_3d(xc, (1, 2, 3), _force_path="C"))
    ref_c = jnp.roll(xc, shift=(1, 2, 3), axis=(1, 2, 3))
    np.testing.assert_array_equal(np.asarray(out_c), np.asarray(ref_c))

    print("KERNEL_OK")
</pallas_src>

<mosaic_0001>
module attributes {stable_mosaic.version = 11 : i64} {
  func.func @kernel(%arg0: i32, %arg1: memref<1x8x8x256xf32, #tpu.memory_space<vmem>>, %arg2: memref<1x8x8x256xf32, #tpu.memory_space<vmem>>) attributes {dimension_semantics = [#tpu.dimension_semantics<parallel>], iteration_bounds = array<i64: 2>, scalar_prefetch = 0 : i64, scratch_operands = 0 : i64, tpu.core_type = #tpu.core_type<tc>, window_params = [{transform_indices = @transform_0, window_bounds = array<i64: 1, 8, 8, 256>}, {transform_indices = @transform_1, window_bounds = array<i64: 1, 8, 8, 256>}]} {
    %c0 = arith.constant 0 : index
    %c0_0 = arith.constant 0 : index
    %c0_1 = arith.constant 0 : index
    %c0_2 = arith.constant 0 : index
    %0 = vector.load %arg1[%c0, %c0_0, %c0_1, %c0_2] : memref<1x8x8x256xf32, #tpu.memory_space<vmem>>, vector<1x1x8x256xf32>
    %1 = vector.shape_cast %0 : vector<1x1x8x256xf32> to vector<8x256xf32>
    %c5_i32 = arith.constant 5 : i32
    %2 = tpu.dynamic_rotate %1 by %c5_i32 dim 0 : vector<8x256xf32>, i32 -> vector<8x256xf32>
    %c32_i32 = arith.constant 32 : i32
    %3 = tpu.dynamic_rotate %2 by %c32_i32 dim 1 : vector<8x256xf32>, i32 -> vector<8x256xf32>
    %c0_3 = arith.constant 0 : index
    %c2 = arith.constant 2 : index
    %c0_4 = arith.constant 0 : index
    %c0_5 = arith.constant 0 : index
    %4 = vector.load %arg2[%c0_3, %c2, %c0_4, %c0_5] : memref<1x8x8x256xf32, #tpu.memory_space<vmem>>, vector<1x1x8x256xf32>
    %5 = vector.shape_cast %4 : vector<1x1x8x256xf32> to vector<8x256xf32>
    %6 = vector.shape_cast %3 : vector<8x256xf32> to vector<1x1x8x256xf32>
    tpu.vector_store %arg2[%c0_3, %c2, %c0_4, %c0_5], %6 {strides = array<i32>} : memref<1x8x8x256xf32, #tpu.memory_space<vmem>>, vector<1x1x8x256xf32>,
    %c0_6 = arith.constant 0 : index
    %c1 = arith.constant 1 : index
    %c0_7 = arith.constant 0 : index
    %c0_8 = arith.constant 0 : index
    %7 = vector.load %arg1[%c0_6, %c1, %c0_7, %c0_8] : memref<1x8x8x256xf32, #tpu.memory_space<vmem>>, vector<1x1x8x256xf32>
    %8 = vector.shape_cast %7 : vector<1x1x8x256xf32> to vector<8x256xf32>
    %c5_i32_9 = arith.constant 5 : i32
    %9 = tpu.dynamic_rotate %8 by %c5_i32_9 dim 0 : vector<8x256xf32>, i32 -> vector<8x256xf32>
    %c32_i32_10 = arith.constant 32 : i32
    %10 = tpu.dynamic_rotate %9 by %c32_i32_10 dim 1 : vector<8x256xf32>, i32 -> vector<8x256xf32>
    %c0_11 = arith.constant 0 : index
    %c3 = arith.constant 3 : index
    %c0_12 = arith.constant 0 : index
    %c0_13 = arith.constant 0 : index
    %11 = vector.load %arg2[%c0_11, %c3, %c0_12, %c0_13] : memref<1x8x8x256xf32, #tpu.memory_space<vmem>>, vector<1x1x8x256xf32>
    %12 = vector.shape_cast %11 : vector<1x1x8x256xf32> to vector<8x256xf32>
    %13 = vector.shape_cast %10 : vector<8x256xf32> to vector<1x1x8x256xf32>
    tpu.vector_store %arg2[%c0_11, %c3, %c0_12, %c0_13], %13 {strides = array<i32>} : memref<1x8x8x256xf32, #tpu.memory_space<vmem>>, vector<1x1x8x256xf32>,
    %c0_14 = arith.constant 0 : index
    %c2_15 = arith.constant 2 : index
    %c0_16 = arith.constant 0 : index
    %c0_17 = arith.constant 0 : index
    %14 = vector.load %arg1[%c0_14, %c2_15, %c0_16, %c0_17] : memref<1x8x8x256xf32, #tpu.memory_space<vmem>>, vector<1x1x8x256xf32>
    %15 = vector.shape_cast %14 : vector<1x1x8x256xf32> to vector<8x256xf32>
    %c5_i32_18 = arith.constant 5 : i32
    %16 = tpu.dynamic_rotate %15 by %c5_i32_18 dim 0 : vector<8x256xf32>, i32 -> vector<8x256xf32>
    %c32_i32_19 = arith.constant 32 : i32
    %17 = tpu.dynamic_rotate %16 by %c32_i32_19 dim 1 : vector<8x256xf32>, i32 -> vector<8x256xf32>
    %c0_20 = arith.constant 0 : index
    %c4 = arith.constant 4 : index
    %c0_21 = arith.constant 0 : index
    %c0_22 = arith.constant 0 : index
    %18 = vector.load %arg2[%c0_20, %c4, %c0_21, %c0_22] : memref<1x8x8x256xf32, #tpu.memory_space<vmem>>, vector<1x1x8x256xf32>
    %19 = vector.shape_cast %18 : vector<1x1x8x256xf32> to vector<8x256xf32>
    %20 = vector.shape_cast %17 : vector<8x256xf32> to vector<1x1x8x256xf32>
    tpu.vector_store %arg2[%c0_20, %c4, %c0_21, %c0_22], %20 {strides = array<i32>} : memref<1x8x8x256xf32, #tpu.memory_space<vmem>>, vector<1x1x8x256xf32>,
    %c0_23 = arith.constant 0 : index
    %c3_24 = arith.constant 3 : index
    %c0_25 = arith.constant 0 : index
    %c0_26 = arith.constant 0 : index
    %21 = vector.load %arg1[%c0_23, %c3_24, %c0_25, %c0_26] : memref<1x8x8x256xf32, #tpu.memory_space<vmem>>, vector<1x1x8x256xf32>
    %22 = vector.shape_cast %21 : vector<1x1x8x256xf32> to vector<8x256xf32>
    %c5_i32_27 = arith.constant 5 : i32
    %23 = tpu.dynamic_rotate %22 by %c5_i32_27 dim 0 : vector<8x256xf32>, i32 -> vector<8x256xf32>
    %c32_i32_28 = arith.constant 32 : i32
    %24 = tpu.dynamic_rotate %23 by %c32_i32_28 dim 1 : vector<8x256xf32>, i32 -> vector<8x256xf32>
    %c0_29 = arith.constant 0 : index
    %c5 = arith.constant 5 : index
    %c0_30 = arith.constant 0 : index
    %c0_31 = arith.constant 0 : index
    %25 = vector.load %arg2[%c0_29, %c5, %c0_30, %c0_31] : memref<1x8x8x256xf32, #tpu.memory_space<vmem>>, vector<1x1x8x256xf32>
    %26 = vector.shape_cast %25 : vector<1x1x8x256xf32> to vector<8x256xf32>
    %27 = vector.shape_cast %24 : vector<8x256xf32> to vector<1x1x8x256xf32>
    tpu.vector_store %arg2[%c0_29, %c5, %c0_30, %c0_31], %27 {strides = array<i32>} : memref<1x8x8x256xf32, #tpu.memory_space<vmem>>, vector<1x1x8x256xf32>,
    %c0_32 = arith.constant 0 : index
    %c4_33 = arith.constant 4 : index
    %c0_34 = arith.constant 0 : index
    %c0_35 = arith.constant 0 : index
    %28 = vector.load %arg1[%c0_32, %c4_33, %c0_34, %c0_35] : memref<1x8x8x256xf32, #tpu.memory_space<vmem>>, vector<1x1x8x256xf32>
    %29 = vector.shape_cast %28 : vector<1x1x8x256xf32> to vector<8x256xf32>
    %c5_i32_36 = arith.constant 5 : i32
    %30 = tpu.dynamic_rotate %29 by %c5_i32_36 dim 0 : vector<8x256xf32>, i32 -> vector<8x256xf32>
    %c32_i32_37 = arith.constant 32 : i32
    %31 = tpu.dynamic_rotate %30 by %c32_i32_37 dim 1 : vector<8x256xf32>, i32 -> vector<8x256xf32>
    %c0_38 = arith.constant 0 : index
    %c6 = arith.constant 6 : index
    %c0_39 = arith.constant 0 : index
    %c0_40 = arith.constant 0 : index
    %32 = vector.load %arg2[%c0_38, %c6, %c0_39, %c0_40] : memref<1x8x8x256xf32, #tpu.memory_space<vmem>>, vector<1x1x8x256xf32>
    %33 = vector.shape_cast %32 : vector<1x1x8x256xf32> to vector<8x256xf32>
    %34 = vector.shape_cast %31 : vector<8x256xf32> to vector<1x1x8x256xf32>
    tpu.vector_store %arg2[%c0_38, %c6, %c0_39, %c0_40], %34 {strides = array<i32>} : memref<1x8x8x256xf32, #tpu.memory_space<vmem>>, vector<1x1x8x256xf32>,
    %c0_41 = arith.constant 0 : index
    %c5_42 = arith.constant 5 : index
    %c0_43 = arith.constant 0 : index
    %c0_44 = arith.constant 0 : index
    %35 = vector.load %arg1[%c0_41, %c5_42, %c0_43, %c0_44] : memref<1x8x8x256xf32, #tpu.memory_space<vmem>>, vector<1x1x8x256xf32>
    %36 = vector.shape_cast %35 : vector<1x1x8x256xf32> to vector<8x256xf32>
    %c5_i32_45 = arith.constant 5 : i32
    %37 = tpu.dynamic_rotate %36 by %c5_i32_45 dim 0 : vector<8x256xf32>, i32 -> vector<8x256xf32>
    %c32_i32_46 = arith.constant 32 : i32
    %38 = tpu.dynamic_rotate %37 by %c32_i32_46 dim 1 : vector<8x256xf32>, i32 -> vector<8x256xf32>
    %c0_47 = arith.constant 0 : index
    %c7 = arith.constant 7 : index
    %c0_48 = arith.constant 0 : index
    %c0_49 = arith.constant 0 : index
    %39 = vector.load %arg2[%c0_47, %c7, %c0_48, %c0_49] : memref<1x8x8x256xf32, #tpu.memory_space<vmem>>, vector<1x1x8x256xf32>
    %40 = vector.shape_cast %39 : vector<1x1x8x256xf32> to vector<8x256xf32>
    %41 = vector.shape_cast %38 : vector<8x256xf32> to vector<1x1x8x256xf32>
    tpu.vector_store %arg2[%c0_47, %c7, %c0_48, %c0_49], %41 {strides = array<i32>} : memref<1x8x8x256xf32, #tpu.memory_space<vmem>>, vector<1x1x8x256xf32>,
    %c0_50 = arith.constant 0 : index
    %c6_51 = arith.constant 6 : index
    %c0_52 = arith.constant 0 : index
    %c0_53 = arith.constant 0 : index
    %42 = vector.load %arg1[%c0_50, %c6_51, %c0_52, %c0_53] : memref<1x8x8x256xf32, #tpu.memory_space<vmem>>, vector<1x1x8x256xf32>
    %43 = vector.shape_cast %42 : vector<1x1x8x256xf32> to vector<8x256xf32>
    %c5_i32_54 = arith.constant 5 : i32
    %44 = tpu.dynamic_rotate %43 by %c5_i32_54 dim 0 : vector<8x256xf32>, i32 -> vector<8x256xf32>
    %c32_i32_55 = arith.constant 32 : i32
    %45 = tpu.dynamic_rotate %44 by %c32_i32_55 dim 1 : vector<8x256xf32>, i32 -> vector<8x256xf32>
    %c0_56 = arith.constant 0 : index
    %c0_57 = arith.constant 0 : index
    %c0_58 = arith.constant 0 : index
    %c0_59 = arith.constant 0 : index
    %46 = vector.load %arg2[%c0_56, %c0_57, %c0_58, %c0_59] : memref<1x8x8x256xf32, #tpu.memory_space<vmem>>, vector<1x1x8x256xf32>
    %47 = vector.shape_cast %46 : vector<1x1x8x256xf32> to vector<8x256xf32>
    %48 = vector.shape_cast %45 : vector<8x256xf32> to vector<1x1x8x256xf32>
    tpu.vector_store %arg2[%c0_56, %c0_57, %c0_58, %c0_59], %48 {strides = array<i32>} : memref<1x8x8x256xf32, #tpu.memory_space<vmem>>, vector<1x1x8x256xf32>,
    %c0_60 = arith.constant 0 : index
    %c7_61 = arith.constant 7 : index
    %c0_62 = arith.constant 0 : index
    %c0_63 = arith.constant 0 : index
    %49 = vector.load %arg1[%c0_60, %c7_61, %c0_62, %c0_63] : memref<1x8x8x256xf32, #tpu.memory_space<vmem>>, vector<1x1x8x256xf32>
    %50 = vector.shape_cast %49 : vector<1x1x8x256xf32> to vector<8x256xf32>
    %c5_i32_64 = arith.constant 5 : i32
    %51 = tpu.dynamic_rotate %50 by %c5_i32_64 dim 0 : vector<8x256xf32>, i32 -> vector<8x256xf32>
    %c32_i32_65 = arith.constant 32 : i32
    %52 = tpu.dynamic_rotate %51 by %c32_i32_65 dim 1 : vector<8x256xf32>, i32 -> vector<8x256xf32>
    %c0_66 = arith.constant 0 : index
    %c1_67 = arith.constant 1 : index
    %c0_68 = arith.constant 0 : index
    %c0_69 = arith.constant 0 : index
    %53 = vector.load %arg2[%c0_66, %c1_67, %c0_68, %c0_69] : memref<1x8x8x256xf32, #tpu.memory_space<vmem>>, vector<1x1x8x256xf32>
    %54 = vector.shape_cast %53 : vector<1x1x8x256xf32> to vector<8x256xf32>
    %55 = vector.shape_cast %52 : vector<8x256xf32> to vector<1x1x8x256xf32>
    tpu.vector_store %arg2[%c0_66, %c1_67, %c0_68, %c0_69], %55 {strides = array<i32>} : memref<1x8x8x256xf32, #tpu.memory_space<vmem>>, vector<1x1x8x256xf32>,
    return
  }
  func.func @transform_0(%arg0: i32) -> (i32, i32, i32, i32) {
    %c0_i32 = arith.constant 0 : i32
    %c0_i32_0 = arith.constant 0 : i32
    %c0_i32_1 = arith.constant 0 : i32
    %c0_i32_2 = arith.constant 0 : i32
    return %arg0, %c0_i32, %c0_i32_0, %c0_i32_1 : i32, i32, i32, i32
  }
  func.func @transform_1(%arg0: i32) -> (i32, i32, i32, i32) {
    %c0_i32 = arith.constant 0 : i32
    %c0_i32_0 = arith.constant 0 : i32
    %c0_i32_1 = arith.constant 0 : i32
    %c0_i32_2 = arith.constant 0 : i32
    return %arg0, %c0_i32, %c0_i32_0, %c0_i32_1 : i32, i32, i32, i32
  }
}

</mosaic_0001>

<llo_original>
// kernel: tpu_custom_call.1
$region0: #{tpu_custom_call.1}
  #allocation0 [shape = 'u32[]', space=smem, size = 0x4, offset = 0x4, fixed_abs, tag = 'smem constant byte address 0x4 - core index']
  #allocation1 [shape = 'u32[144,128]{1,0:T(1,128)}', space=vmem, size = 0x12000, scoped, tag = 'internal scratch']
  %s0 = inlined_call_operand.hbm [shape: f32[2,8,8,256], index: 0, kind: input, shape index: {}]
  %s1 = inlined_call_operand.hbm [shape: f32[2,8,8,256], index: 1, kind: output, shape index: {}]
  %s2 = sld [smem:[#allocation0]]
  $region41: #{tpu_custom_call.1} parent=0
    _
  %s4 = ssub.s32 1, %s2
  %s5 = scalar_select 0, %s4, %s2
  $region1: #{tpu_custom_call.1} parent=0
    #allocation2 [shape = 'u8[131072]{0}', space=vmem, size = 0x20000, scoped, tag = 'input window, operand 0']
    #allocation3 [shape = 's32[2]{0}', space=sflag, size = 0x8, scoped, tag = 'scoped memory for tpu_custom_call.1']
    #allocation4 [shape = 's32[2]{0}', space=sflag, size = 0x8, scoped, tag = 'scoped memory for tpu_custom_call.1']
    #allocation5 [shape = 'u8[131072]{0}', space=vmem, size = 0x20000, scoped, tag = 'output window, operand 0']
    %6 = vsyncpa [#allocation3], 0
    %s7 = scalar_lea.sflag [#allocation3], 1
    %8 = vsyncpa %s7, 0
    %9 = vsyncpa [#allocation4], 0
    %s10 = scalar_lea.sflag [#allocation4], 1
    %11 = vsyncpa %s10, 0
    loop: start=0, step=1, limit=4
    $region2: #{tpu_custom_call.1} parent=1 // loop_pre_header
      _
    $region3: #{tpu_custom_call.1} parent=1 // loop_header
      %s13 = sphi 0, %s17
      %p14 = scmp.ge.s32.totalorder %s13, 4
      %s23 = sphi 0, %s25
      %s26 = sphi 0, %s23
      %s27 = sphi 0, %s26
      %s43 = sphi 0, %s27
      %s49 = sphi 0, %s51
      %s52 = sphi 0, %s49
      %s53 = sphi 0, %s52
      %s69 = sphi 0, %s53
    $region4: #{tpu_custom_call.1} parent=1 // loop_header_branch
      %16 = sbr.rel (%p14) target = $region8
    $region5: #{tpu_custom_call.1} parent=1 // loop_body
      %s18 = ssub.s32 %s13, 1
      %s19 = ssub.s32 %s13, 2
      %s20 = sadd.s32 %s13, 1
      %s21 = ssub.s32 %s13, %s20
      %p22 = scmp.eq.s32.totalorder %s21, 0
      %s24 = sadd.s32 %s23, 1
      %s25 = scalar_select %p22, %s23, %s24
      %p28 = pneg %p22
      %p29 = scmp.eq.s32.totalorder %s13, 1
      %p30 = por %p28, %p29
      %p31 = scmp.ne.s32.totalorder %s23, %s26
      %p32 = scmp.eq.s32.totalorder %s13, 0
      %p33 = por %p31, %p32
      %p34 = scmp.ne.s32.totalorder %s23, %s26
      %p35 = scmp.eq.s32.totalorder %s18, 1
      %p36 = por %p34, %p35
      %p37 = scmp.ne.s32.totalorder %s26, %s27
      %p38 = scmp.eq.s32.totalorder %s18, 0
      %p39 = por %p37, %p38
      %p40 = scmp.ne.s32.totalorder %s26, %s27
      %p41 = scmp.eq.s32.totalorder %s19, 1
      %p42 = por %p40, %p41
      %p44 = scmp.ne.s32.totalorder %s27, %s43
      %p45 = scmp.eq.s32.totalorder %s19, 0
      %p46 = por %p44, %p45
      %s47 = ssub.s32 %s13, %s20
      %p48 = scmp.eq.s32.totalorder %s47, 0
      %s50 = sadd.s32 %s49, 1
      %s51 = scalar_select %p48, %s49, %s50
      %p54 = pneg %p48
      %p55 = scmp.eq.s32.totalorder %s13, 1
      %p56 = por %p54, %p55
      %p57 = scmp.ne.s32.totalorder %s49, %s52
      %p58 = scmp.eq.s32.totalorder %s13, 0
      %p59 = por %p57, %p58
      %p60 = scmp.ne.s32.totalorder %s49, %s52
      %p61 = scmp.eq.s32.totalorder %s18, 1
      %p62 = por %p60, %p61
      %p63 = scmp.ne.s32.totalorder %s52, %s53
      %p64 = scmp.eq.s32.totalorder %s18, 0
      %p65 = por %p63, %p64
      %p66 = scmp.ne.s32.totalorder %s52, %s53
      %p67 = scmp.eq.s32.totalorder %s19, 1
      %p68 = por %p66, %p67
      %p70 = scmp.ne.s32.totalorder %s53, %s69
      %p71 = scmp.eq.s32.totalorder %s19, 0
      %p72 = por %p70, %p71
      %p73 = scmp.le.s32.totalorder 1, %s13
      %p74 = scmp.lt.s32.totalorder %s13, 3
      %p75 = pnand %p73, %p74
      %p76 = pneg %p75
      // Predicated region
      $region9: #{tpu_custom_call.1} parent=5 // pred_check
        _
      $region10: #{tpu_custom_call.1} parent=5 // pred_check_branch
        %78 = sbr.rel (%p75) target = $region12
      $region11: #{tpu_custom_call.1} parent=5 // pred_region
        %s79 = ssub.s32 %s13, 1
      $region12: #{tpu_custom_call.1} parent=5 // pred_fallthru
        _
      %p80 = scmp.lt.s32.totalorder %s13, 2
      // Predicated region
      $region13: #{tpu_custom_call.1} parent=5 // pred_check
        %p81 = pneg %p80
      $region14: #{tpu_custom_call.1} parent=5 // pred_check_branch
        %83 = sbr.rel (%p81) target = $region16
      $region15: #{tpu_custom_call.1} parent=5 // pred_region
        // Predicated region
        $region17: #{tpu_custom_call.1} parent=15 // pred_check
          %p84 = pneg %p33
        $region18: #{tpu_custom_call.1} parent=15 // pred_check_branch
          %86 = sbr.rel (%p84) target = $region20
        $region19: #{tpu_custom_call.1} parent=15 // pred_region
          %s87 = sand.u32 %s23, 1
          %s88 = scalar_lea.sflag [#allocation3], %s87
          %s89 = sand.u32 %s23, 1
          %s90 = smul.addr %s89, 128
          %s91 = scalar_lea.vmem [#allocation2], %s90
          %s93 = ssub.s32 2048, 2048
          %94 = vsyncadd %s88, %s93
          %s95 = smul.addr %s13, 16
          %s96 = smul.addr %s95, 128
          %s97 = scalar_lea.hbm %s0, %s96
          %s98 = sshll.u32 %s91, 4
          %s99 = int_to_ptr.vmem [resolvable:$true] %s98
          %104 = dma.hbm_to_vmem [thread:$0]  %s97, 2048, %s99, %s88, 256, 256, 16
        $region20: #{tpu_custom_call.1} parent=15 // pred_fallthru
          _
      $region16: #{tpu_custom_call.1} parent=5 // pred_fallthru
        _
      %p105 = scmp.le.s32.totalorder 1, %s13
      %p106 = scmp.lt.s32.totalorder %s13, 3
      %p107 = pnand %p105, %p106
      %p108 = pneg %p107
      // Predicated region
      $region21: #{tpu_custom_call.1} parent=5 // pred_check
        _
      $region22: #{tpu_custom_call.1} parent=5 // pred_check_branch
        %110 = sbr.rel (%p107) target = $region24
      $region23: #{tpu_custom_call.1} parent=5 // pred_region
        %s111 = ssub.s32 %s13, 1
        %s112 = sand.u32 %s26, 1
        %s113 = scalar_lea.sflag [#allocation3], %s112
        %s114 = sand.u32 %s26, 1
        %s115 = smul.addr %s114, 128
        %s116 = scalar_lea.vmem [#allocation2], %s115
        // Predicated region
        $region25: #{tpu_custom_call.1} parent=23 // pred_check
          %p117 = pneg %p39
        $region26: #{tpu_custom_call.1} parent=23 // pred_check_branch
          %119 = sbr.rel (%p117) target = $region28
        $region27: #{tpu_custom_call.1} parent=23 // pred_region
          %120 = dma.done %s113, 2048
        $region28: #{tpu_custom_call.1} parent=23 // pred_fallthru
          _
        %s121 = sand.u32 %s26, 1
        %s122 = scalar_lea.sflag [#allocation3], %s121
        %s123 = sand.u32 %s26, 1
        %s124 = smul.addr %s123, 128
        %s125 = scalar_lea.vmem [#allocation2], %s124
        %p126 = pneg %p39
        %p127 = pneg %p36
        %p128 = pneg %p65
        %p129 = pneg %p62
        %s130 = sand.u32 %s52, 1
        %s131 = scalar_lea.sflag [#allocation4], %s130
        %s132 = sand.u32 %s52, 1
        %s133 = smul.addr %s132, 128
        %s134 = scalar_lea.vmem [#allocation5], %s133
        %v135 = vld [vmem:[%s116] sm:$0xff]
        %v136 = vld [vmem:[%s116 + $0x8] sm:$0xff]
        %v137 = vrot.slane %v135, 3
        %v138 = vrot.slane %v136, 3
        %139 = vrot.lane.b32.xlu0 %v137, 32
        %v140 = vpop.permute.xlu0 %139
        %141 = vrot.lane.b32.xlu0 %v138, 32
        %v142 = vpop.permute.xlu0 %141
        %v143 = vlaneseq
        %v144 = vand.u32 %v143, 127
        %vm145 = vcmp.lt.s32.totalorder %v144, 32
        %v146 = vsel %vm145, %v140, %v142
        %v147 = vsel %vm145, %v142, %v140
        %s148 = scalar_lea.vmem %s134, 32 [#allocation5]
        %149 = vst [vmem:[%s148] sm:$0xff] %v147
        %150 = vst [vmem:[%s148 + $0x8] sm:$0xff] %v146
        %s151 = scalar_lea.vmem %s116, 16 [#allocation2]
        %v152 = vld [vmem:[%s151] sm:$0xff]
        %v153 = vld [vmem:[%s151 + $0x8] sm:$0xff]
        %v154 = vrot.slane %v152, 3
        %v155 = vrot.slane %v153, 3
        %156 = vrot.lane.b32.xlu0 %v154, 32
        %v157 = vpop.permute.xlu0 %156
        %158 = vrot.lane.b32.xlu0 %v155, 32
        %v159 = vpop.permute.xlu0 %158
        %v160 = vsel %vm145, %v157, %v159
        %v161 = vsel %vm145, %v159, %v157
        %s162 = scalar_lea.vmem %s134, 48 [#allocation5]
        %163 = vst [vmem:[%s162] sm:$0xff] %v161
        %164 = vst [vmem:[%s162 + $0x8] sm:$0xff] %v160
        %s165 = scalar_lea.vmem %s116, 32 [#allocation2]
        %v166 = vld [vmem:[%s165] sm:$0xff]
        %v167 = vld [vmem:[%s165 + $0x8] sm:$0xff]
        %v168 = vrot.slane %v166, 3
        %v169 = vrot.slane %v167, 3
        %170 = vrot.lane.b32.xlu0 %v168, 32
        %v171 = vpop.permute.xlu0 %170
        %172 = vrot.lane.b32.xlu0 %v169, 32
        %v173 = vpop.permute.xlu0 %172
        %v174 = vsel %vm145, %v171, %v173
        %v175 = vsel %vm145, %v173, %v171
        %s176 = scalar_lea.vmem %s134, 64 [#allocation5]
        %177 = vst [vmem:[%s176] sm:$0xff] %v175
        %178 = vst [vmem:[%s176 + $0x8] sm:$0xff] %v174
        %s179 = scalar_lea.vmem %s116, 48 [#allocation2]
        %v180 = vld [vmem:[%s179] sm:$0xff]
        %v181 = vld [vmem:[%s179 + $0x8] sm:$0xff]
        %v182 = vrot.slane %v180, 3
        %v183 = vrot.slane %v181, 3
        %184 = vrot.lane.b32.xlu0 %v182, 32
        %v185 = vpop.permute.xlu0 %184
        %186 = vrot.lane.b32.xlu0 %v183, 32
        %v187 = vpop.permute.xlu0 %186
        %v188 = vsel %vm145, %v185, %v187
        %v189 = vsel %vm145, %v187, %v185
        %s190 = scalar_lea.vmem %s134, 80 [#allocation5]
        %191 = vst [vmem:[%s190] sm:$0xff] %v189
        %192 = vst [vmem:[%s190 + $0x8] sm:$0xff] %v188
        %s193 = scalar_lea.vmem %s116, 64 [#allocation2]
        %v194 = vld [vmem:[%s193] sm:$0xff]
        %v195 = vld [vmem:[%s193 + $0x8] sm:$0xff]
        %v196 = vrot.slane %v194, 3
        %v197 = vrot.slane %v195, 3
        %198 = vrot.lane.b32.xlu0 %v196, 32
        %v199 = vpop.permute.xlu0 %198
        %200 = vrot.lane.b32.xlu0 %v197, 32
        %v201 = vpop.permute.xlu0 %200
        %v202 = vsel %vm145, %v199, %v201
        %v203 = vsel %vm145, %v201, %v199
        %s204 = scalar_lea.vmem %s134, 96 [#allocation5]
        %205 = vst [vmem:[%s204] sm:$0xff] %v203
        %206 = vst [vmem:[%s204 + $0x8] sm:$0xff] %v202
        %s207 = scalar_lea.vmem %s116, 80 [#allocation2]
        %v208 = vld [vmem:[%s207] sm:$0xff]
        %v209 = vld [vmem:[%s207 + $0x8] sm:$0xff]
        %v210 = vrot.slane %v208, 3
        %v211 = vrot.slane %v209, 3
        %212 = vrot.lane.b32.xlu0 %v210, 32
        %v213 = vpop.permute.xlu0 %212
        %214 = vrot.lane.b32.xlu0 %v211, 32
        %v215 = vpop.permute.xlu0 %214
        %v216 = vsel %vm145, %v213, %v215
        %v217 = vsel %vm145, %v215, %v213
        %s218 = scalar_lea.vmem %s134, 112 [#allocation5]
        %219 = vst [vmem:[%s218] sm:$0xff] %v217
        %220 = vst [vmem:[%s218 + $0x8] sm:$0xff] %v216
        %s221 = scalar_lea.vmem %s116, 96 [#allocation2]
        %v222 = vld [vmem:[%s221] sm:$0xff]
        %v223 = vld [vmem:[%s221 + $0x8] sm:$0xff]
        %v224 = vrot.slane %v222, 3
        %v225 = vrot.slane %v223, 3
        %226 = vrot.lane.b32.xlu0 %v224, 32
        %v227 = vpop.permute.xlu0 %226
        %228 = vrot.lane.b32.xlu0 %v225, 32
        %v229 = vpop.permute.xlu0 %228
        %v230 = vsel %vm145, %v227, %v229
        %v231 = vsel %vm145, %v229, %v227
        %232 = vst [vmem:[%s134] sm:$0xff] %v231
        %233 = vst [vmem:[%s134 + $0x8] sm:$0xff] %v230
        %s234 = scalar_lea.vmem %s116, 112 [#allocation2]
        %v235 = vld [vmem:[%s234] sm:$0xff]
        %v236 = vld [vmem:[%s234 + $0x8] sm:$0xff]
        %v237 = vrot.slane %v235, 3
        %v238 = vrot.slane %v236, 3
        %239 = vrot.lane.b32.xlu0 %v237, 32
        %v240 = vpop.permute.xlu0 %239
        %241 = vrot.lane.b32.xlu0 %v238, 32
        %v242 = vpop.permute.xlu0 %241
        %v243 = vsel %vm145, %v240, %v242
        %v244 = vsel %vm145, %v242, %v240
        %s245 = scalar_lea.vmem %s134, 16 [#allocation5]
        %246 = vst [vmem:[%s245] sm:$0xff] %v244
        %247 = vst [vmem:[%s245 + $0x8] sm:$0xff] %v243
        %s248 = sand.u32 %s52, 1
        %s249 = scalar_lea.sflag [#allocation4], %s248
        %s250 = sand.u32 %s52, 1
        %s251 = smul.addr %s250, 128
        %s252 = scalar_lea.vmem [#allocation5], %s251
        // Predicated region
        $region29: #{tpu_custom_call.1} parent=23 // pred_check
          %p253 = pneg %p62
        $region30: #{tpu_custom_call.1} parent=23 // pred_check_branch
          %255 = sbr.rel (%p253) target = $region32
        $region31: #{tpu_custom_call.1} parent=23 // pred_region
          %s257 = ssub.s32 2048, 2048
          %258 = vsyncadd %s249, %s257
          %s259 = smul.addr %s18, 16
          %s260 = smul.addr %s259, 128
          %s261 = scalar_lea.hbm %s1, %s260
          %s262 = sshll.u32 %s252, 4
          %s263 = int_to_ptr.vmem [resolvable:$true] %s262
          %268 = dma.vmem_to_hbm [thread:$0]  %s263, 2048, %s261, %s249, 256, 256, 16
        $region32: #{tpu_custom_call.1} parent=23 // pred_fallthru
          _
      $region24: #{tpu_custom_call.1} parent=5 // pred_fallthru
        _
      %p269 = scmp.le.s32.totalorder 2, %s13
      // Predicated region
      $region33: #{tpu_custom_call.1} parent=5 // pred_check
        %p270 = pneg %p269
      $region34: #{tpu_custom_call.1} parent=5 // pred_check_branch
        %272 = sbr.rel (%p270) target = $region36
      $region35: #{tpu_custom_call.1} parent=5 // pred_region
        %s273 = ssub.s32 %s13, 2
        // Predicated region
        $region37: #{tpu_custom_call.1} parent=35 // pred_check
          %p274 = pneg %p68
        $region38: #{tpu_custom_call.1} parent=35 // pred_check_branch
          %276 = sbr.rel (%p274) target = $region40
        $region39: #{tpu_custom_call.1} parent=35 // pred_region
          %s277 = sand.u32 %s53, 1
          %s278 = scalar_lea.sflag [#allocation4], %s277
          %s279 = sand.u32 %s53, 1
          %s280 = smul.addr %s279, 128
          %s281 = scalar_lea.vmem [#allocation5], %s280
          %282 = dma.done %s278, 2048
        $region40: #{tpu_custom_call.1} parent=35 // pred_fallthru
          _
      $region36: #{tpu_custom_call.1} parent=5 // pred_fallthru
        _
    $region6: #{tpu_custom_call.1} parent=1 // loop_footer
      %s17 = sadd.s32 1, %s13
    $region7: #{tpu_custom_call.1} parent=1 // loop_footer_branch
      %12 = sbr.rel target = $region3
    $region8: #{tpu_custom_call.1} parent=1 // loop_exit
      _
    %283 = vsyncpa [#allocation3], 1
    %s284 = scalar_lea.sflag [#allocation3], 1
    %285 = vsyncpa %s284, 1
    %286 = vsyncpa [#allocation4], 1
    %s287 = scalar_lea.sflag [#allocation4], 1
    %288 = vsyncpa %s287, 1

</llo_original>
